<compile_context>
chip_gen: v7x
topology: tpu7x:2x2x1
jax: 0.10.0
libtpu: 0.0.40
codegen_flags: <defaults>
</compile_context>

<pallas_src>
import functools

import jax
import jax.numpy as jnp
from jax.experimental import pallas as pl
from jax.experimental.pallas import tpu as pltpu


# ----------------------------- kernel ---------------------------------------


def qnet1_kernel(xa_ref, w1_ref, b1_ref,
                 w2a_ref, b2a_ref, w2b_ref, b2b_ref,
                 w3a_ref, w3b_ref, b3_ref, out_ref):
    xa = xa_ref[...]                                             # (TB, 128)

    # layer 1: fused fc_sA/fc_aA/fc_sB/fc_aB -> (TB, 512), relu.
    # Hidden layout = [h1A | h2A | h1B | h2B]  (implements torch.cat).
    h = jnp.maximum(
        jnp.dot(xa, w1_ref[...], preferred_element_type=jnp.float32)
        + b1_ref[...], 0.0)

    # layer 2: two dense (TB,256)@(256,256) dots (no block-diag zeros).
    # h[:, :256] / h[:, 256:] are 128-lane-aligned slices -> free views.
    qA = jnp.maximum(
        jnp.dot(h[:, :256], w2a_ref[...], preferred_element_type=jnp.float32)
        + b2a_ref[...], 0.0)
    qB = jnp.maximum(
        jnp.dot(h[:, 256:], w2b_ref[...], preferred_element_type=jnp.float32)
        + b2b_ref[...], 0.0)

    # layer 3: width-1 heads on VPU (mul) + XLU (lane reduce), MXU stays free.
    q1 = jnp.sum(qA * w3a_ref[...], axis=-1, keepdims=True)     # (TB, 1)
    q2 = jnp.sum(qB * w3b_ref[...], axis=-1, keepdims=True)     # (TB, 1)

    # Lane-dense (TB,128) output slab: lane 0 = q1, lane 1 = q2, rest 0.
    lane = jax.lax.broadcasted_iota(jnp.int32, out_ref.shape, 1)
    out_ref[...] = (jnp.where(lane == 0, q1, jnp.where(lane == 1, q2, 0.0))
                    + b3_ref[...])


# ----------------------------- params ---------------------------------------


def _init_linear(key, in_features, out_features):
    """PyTorch nn.Linear-style init, returned as (W^T (in,out), b (1,out))."""
    kw, kb = jax.random.split(key)
    bound = 1.0 / jnp.sqrt(jnp.float32(in_features))
    w = jax.random.uniform(kw, (out_features, in_features), jnp.float32,
                           minval=-bound, maxval=bound)
    b = jax.random.uniform(kb, (out_features,), jnp.float32,
                           minval=-bound, maxval=bound)
    return w.T, b.reshape(1, out_features)


def make_raw_params(key):
    keys = jax.random.split(key, 8)
    wsA, bsA = _init_linear(keys[0], 24, 128)
    waA, baA = _init_linear(keys[1], 4, 128)
    wqA, bqA = _init_linear(keys[2], 256, 256)
    woA, boA = _init_linear(keys[3], 256, 1)
    wsB, bsB = _init_linear(keys[4], 24, 128)
    waB, baB = _init_linear(keys[5], 4, 128)
    wqB, bqB = _init_linear(keys[6], 256, 256)
    woB, boB = _init_linear(keys[7], 256, 1)
    return dict(wsA=wsA, bsA=bsA, waA=waA, baA=baA, wqA=wqA, bqA=bqA,
                woA=woA, boA=boA,
                wsB=wsB, bsB=bsB, waB=waB, baB=baB, wqB=wqB, bqB=bqB,
                woB=woB, boB=boB)


def pack_params(p):
    """Build the fused weights ONCE (outside the hot path)."""
    # layer 1: (128, 512).  xa is zero-padded to 128 lanes in the wrapper;
    # rows 28..127 are zero so the padding contributes nothing.
    # Column layout = [h1A | h2A | h1B | h2B].
    w1 = jnp.zeros((128, 512), jnp.float32)
    w1 = w1.at[0:24, 0:128].set(p["wsA"])
    w1 = w1.at[24:28, 128:256].set(p["waA"])
    w1 = w1.at[0:24, 256:384].set(p["wsB"])
    w1 = w1.at[24:28, 384:512].set(p["waB"])
    b1 = jnp.concatenate([p["bsA"], p["baA"], p["bsB"], p["baB"]], axis=1)

    # layer 2: two DENSE (256,256) blocks (no zero-padded block-diag).
    # Rows act on [h1A|h2A] == torch.cat([h1A, h2A], dim=1); same for B.
    w2a, b2a = p["wqA"], p["bqA"]
    w2b, b2b = p["wqB"], p["bqB"]

    # layer 3: head weights as (1,256) row vectors for the VPU/XLU reduction;
    # biases packed into lanes 0/1 of a (1,128) slab.
    w3a = p["woA"].reshape(1, 256)
    w3b = p["woB"].reshape(1, 256)
    b3 = jnp.zeros((1, 128), jnp.float32)
    b3 = b3.at[0, 0].set(p["boA"][0, 0])
    b3 = b3.at[0, 1].set(p["boB"][0, 0])

    return dict(w1=w1, b1=b1, w2a=w2a, b2a=b2a, w2b=w2b, b2b=b2b,
                w3a=w3a, w3b=w3b, b3=b3)


# ----------------------------- wrapper ---------------------------------------


def _round_up(n, m):
    return ((n + m - 1) // m) * m


def _detect_num_tensorcores():
    """v7x has 2 TensorCores per chip; everything earlier has 1."""
    try:
        kind = jax.devices()[0].device_kind.lower()
    except Exception:
        return 1
    return 2 if "v7" in kind else 1


@functools.partial(jax.jit, static_argnames=("block_b", "num_cores"))
def qnet1_forward(x, a, packed, *, block_b=1024, num_cores=1):
    """Returns (q1, q2), each (B, 1) f32, matching QNet1.forward."""
    B = x.shape[0]
    num_cores = max(int(num_cores), 1)

    # Batch tile: whole batch split into `num_cores` balanced tiles
    # (grid=1 on v5e/v6e, an even 2-way split on v7x), always a multiple of
    # 8 sublanes, capped at block_b.  VMEM footprint is only a few MiB even
    # at tb=1024, far below every generation's scoped limit.
    tb = min(_round_up(block_b, 8), _round_up(pl.cdiv(B, num_cores), 8))
    tb = max(tb, 8)
    b_pad = _round_up(B, tb)

    # Lane-dense (b_pad, 128) input slab: cols 0:24 = x, 24:28 = a, rest 0
    # (hits zero rows of w1).  Padded batch rows are zero and sliced off.
    xa = jnp.zeros((b_pad, 128), jnp.float32)
    xa = xa.at[:B, 0:24].set(x.astype(jnp.float32))
    xa = xa.at[:B, 24:28].set(a.astype(jnp.float32))

    const = lambda i: (0, 0)   # weights stay VMEM-resident across the grid
    # NOTE: at these sizes weight double-buffering is harmless; revisit with
    # pipeline_mode=pl.Buffered(1) only if the model / tile grows.
    out = pl.pallas_call(
        qnet1_kernel,
        out_shape=jax.ShapeDtypeStruct((b_pad, 128), jnp.float32),
        grid=(b_pad // tb,),
        in_specs=[
            pl.BlockSpec((tb, 128), lambda i: (i, 0)),       # xa (batch-tiled)
            pl.BlockSpec((128, 512), const),                 # w1
            pl.BlockSpec((1, 512), const),                   # b1
            pl.BlockSpec((256, 256), const),                 # w2A
            pl.BlockSpec((1, 256), const),                   # b2A
            pl.BlockSpec((256, 256), const),                 # w2B
            pl.BlockSpec((1, 256), const),                   # b2B
            pl.BlockSpec((1, 256), const),                   # w3A row
            pl.BlockSpec((1, 256), const),                   # w3B row
            pl.BlockSpec((1, 128), const),                   # b3 slab
        ],
        out_specs=pl.BlockSpec((tb, 128), lambda i: (i, 0)),
        compiler_params=pltpu.CompilerParams(
            dimension_semantics=("parallel",)),
    )(xa, packed["w1"], packed["b1"],
      packed["w2a"], packed["b2a"], packed["w2b"], packed["b2b"],
      packed["w3a"], packed["w3b"], packed["b3"])

    q1 = out[:B, 0:1]
    q2 = out[:B, 1:2]
    return q1, q2


# ----------------------------- reference -------------------------------------


def qnet1_reference(x, a, p):
    """Pure-JAX replica of the PyTorch forward (unfused params)."""
    def branch(ws, bs, wa, ba, wq, bq, wo, bo):
        h1 = jax.nn.relu(x @ ws + bs)
        h2 = jax.nn.relu(a @ wa + ba)
        cat = jnp.concatenate([h1, h2], axis=1)
        q = jax.nn.relu(cat @ wq + bq)
        return q @ wo + bo
    q1 = branch(p["wsA"], p["bsA"], p["waA"], p["baA"],
                p["wqA"], p["bqA"], p["woA"], p["boA"])
    q2 = branch(p["wsB"], p["bsB"], p["waB"], p["baB"],
                p["wqB"], p["bqB"], p["woB"], p["boB"])
    return q1, q2


# ----------------------------- test ------------------------------------------


if __name__ == "__main__":
    key = jax.random.PRNGKey(0)
    k_x, k_a, k_p, k_x2, k_a2 = jax.random.split(key, 5)

    raw = make_raw_params(k_p)
    packed = pack_params(raw)           # built once, reused across calls
    n_tc = _detect_num_tensorcores()

    # small inference-style batch (grid = 1)
    B = 8
    x = jax.random.normal(k_x, (B, 24), dtype=jnp.float32)
    a = jax.random.normal(k_a, (B, 4), dtype=jnp.float32)
    q1, q2 = qnet1_forward(x, a, packed, num_cores=n_tc)
    q1 = jax.block_until_ready(q1)
    q2 = jax.block_until_ready(q2)
    r1, r2 = qnet1_reference(x, a, raw)
    assert q1.shape == (B, 1) and q2.shape == (B, 1)
    assert jnp.allclose(q1, r1, atol=1e-4, rtol=1e-4)
    assert jnp.allclose(q2, r2, atol=1e-4, rtol=1e-4)

    # larger training-style batch; num_cores=2 forces a balanced 2-tile grid
    # (exercises batch padding + multi-step / megacore path on any chip).
    B2 = 600
    x2 = jax.random.normal(k_x2, (B2, 24), dtype=jnp.float32)
    a2 = jax.random.normal(k_a2, (B2, 4), dtype=jnp.float32)
    q1b, q2b = qnet1_forward(x2, a2, packed, num_cores=2)
    q1b = jax.block_until_ready(q1b)
    q2b = jax.block_until_ready(q2b)
    r1b, r2b = qnet1_reference(x2, a2, raw)
    assert q1b.shape == (B2, 1) and q2b.shape == (B2, 1)
    assert jnp.allclose(q1b, r1b, atol=1e-4, rtol=1e-4)
    assert jnp.allclose(q2b, r2b, atol=1e-4, rtol=1e-4)

    # same big batch on the device-native core count (grid = 1 on v5e/v6e)
    q1c, q2c = qnet1_forward(x2, a2, packed, num_cores=n_tc)
    q1c = jax.block_until_ready(q1c)
    q2c = jax.block_until_ready(q2c)
    assert jnp.allclose(q1c, r1b, atol=1e-4, rtol=1e-4)
    assert jnp.allclose(q2c, r2b, atol=1e-4, rtol=1e-4)

    print("KERNEL_OK")
</pallas_src>

<mosaic_0001>
module attributes {stable_mosaic.version = 11 : i64} {
  func.func @qnet1_kernel(%arg0: i32, %arg1: memref<8x128xf32, #tpu.memory_space<vmem>>, %arg2: memref<128x512xf32, #tpu.memory_space<vmem>>, %arg3: memref<1x512xf32, #tpu.memory_space<vmem>>, %arg4: memref<256x256xf32, #tpu.memory_space<vmem>>, %arg5: memref<1x256xf32, #tpu.memory_space<vmem>>, %arg6: memref<256x256xf32, #tpu.memory_space<vmem>>, %arg7: memref<1x256xf32, #tpu.memory_space<vmem>>, %arg8: memref<1x256xf32, #tpu.memory_space<vmem>>, %arg9: memref<1x256xf32, #tpu.memory_space<vmem>>, %arg10: memref<1x128xf32, #tpu.memory_space<vmem>>, %arg11: memref<8x128xf32, #tpu.memory_space<vmem>>) attributes {dimension_semantics = [#tpu.dimension_semantics<parallel>], iteration_bounds = array<i64: 1>, scalar_prefetch = 0 : i64, scratch_operands = 0 : i64, tpu.core_type = #tpu.core_type<tc>, window_params = [{transform_indices = @transform_0, window_bounds = array<i64: 8, 128>}, {pipeline_mode = #tpu.pipeline_mode<synchronous>, transform_indices = @transform_1, window_bounds = array<i64: 128, 512>}, {pipeline_mode = #tpu.pipeline_mode<synchronous>, transform_indices = @transform_2, window_bounds = array<i64: 1, 512>}, {pipeline_mode = #tpu.pipeline_mode<synchronous>, transform_indices = @transform_3, window_bounds = array<i64: 256, 256>}, {pipeline_mode = #tpu.pipeline_mode<synchronous>, transform_indices = @transform_4, window_bounds = array<i64: 1, 256>}, {pipeline_mode = #tpu.pipeline_mode<synchronous>, transform_indices = @transform_5, window_bounds = array<i64: 256, 256>}, {pipeline_mode = #tpu.pipeline_mode<synchronous>, transform_indices = @transform_6, window_bounds = array<i64: 1, 256>}, {pipeline_mode = #tpu.pipeline_mode<synchronous>, transform_indices = @transform_7, window_bounds = array<i64: 1, 256>}, {pipeline_mode = #tpu.pipeline_mode<synchronous>, transform_indices = @transform_8, window_bounds = array<i64: 1, 256>}, {pipeline_mode = #tpu.pipeline_mode<synchronous>, transform_indices = @transform_9, window_bounds = array<i64: 1, 128>}, {transform_indices = @transform_10, window_bounds = array<i64: 8, 128>}]} {
    %c0 = arith.constant 0 : index
    %c0_0 = arith.constant 0 : index
    %0 = vector.load %arg1[%c0, %c0_0] : memref<8x128xf32, #tpu.memory_space<vmem>>, vector<8x128xf32>
    %c0_1 = arith.constant 0 : index
    %c0_2 = arith.constant 0 : index
    %1 = vector.load %arg2[%c0_1, %c0_2] : memref<128x512xf32, #tpu.memory_space<vmem>>, vector<128x512xf32>
    %cst = arith.constant dense<0.000000e+00> : vector<8x512xf32>
    %2 = tpu.matmul %0, %1, %cst {dimension_numbers = #tpu.dot_dimension_numbers<[1], [0], [0], [1], [0, 0, 1, 1], [], []>} : vector<8x128xf32>, vector<128x512xf32>, vector<8x512xf32> -> vector<8x512xf32>
    %c0_3 = arith.constant 0 : index
    %c0_4 = arith.constant 0 : index
    %3 = vector.load %arg3[%c0_3, %c0_4] : memref<1x512xf32, #tpu.memory_space<vmem>>, vector<1x512xf32>
    %4 = vector.broadcast %3 : vector<1x512xf32> to vector<8x512xf32>
    %5 = arith.addf %2, %4 : vector<8x512xf32>
    %cst_5 = arith.constant 0.000000e+00 : f32
    %6 = vector.broadcast %cst_5 : f32 to vector<8x512xf32>
    %7 = arith.maximumf %5, %6 : vector<8x512xf32>
    %8 = vector.extract_strided_slice %7 {offsets = [0, 0], sizes = [8, 256], strides = [1, 1]} : vector<8x512xf32> to vector<8x256xf32>
    %c0_6 = arith.constant 0 : index
    %c0_7 = arith.constant 0 : index
    %9 = vector.load %arg4[%c0_6, %c0_7] : memref<256x256xf32, #tpu.memory_space<vmem>>, vector<256x256xf32>
    %cst_8 = arith.constant dense<0.000000e+00> : vector<8x256xf32>
    %10 = tpu.matmul %8, %9, %cst_8 {dimension_numbers = #tpu.dot_dimension_numbers<[1], [0], [0], [1], [0, 0, 1, 1], [], []>} : vector<8x256xf32>, vector<256x256xf32>, vector<8x256xf32> -> vector<8x256xf32>
    %c0_9 = arith.constant 0 : index
    %c0_10 = arith.constant 0 : index
    %11 = vector.load %arg5[%c0_9, %c0_10] : memref<1x256xf32, #tpu.memory_space<vmem>>, vector<1x256xf32>
    %12 = vector.broadcast %11 : vector<1x256xf32> to vector<8x256xf32>
    %13 = arith.addf %10, %12 : vector<8x256xf32>
    %cst_11 = arith.constant 0.000000e+00 : f32
    %14 = vector.broadcast %cst_11 : f32 to vector<8x256xf32>
    %15 = arith.maximumf %13, %14 : vector<8x256xf32>
    %16 = vector.extract_strided_slice %7 {offsets = [0, 256], sizes = [8, 256], strides = [1, 1]} : vector<8x512xf32> to vector<8x256xf32>
    %c0_12 = arith.constant 0 : index
    %c0_13 = arith.constant 0 : index
    %17 = vector.load %arg6[%c0_12, %c0_13] : memref<256x256xf32, #tpu.memory_space<vmem>>, vector<256x256xf32>
    %cst_14 = arith.constant dense<0.000000e+00> : vector<8x256xf32>
    %18 = tpu.matmul %16, %17, %cst_14 {dimension_numbers = #tpu.dot_dimension_numbers<[1], [0], [0], [1], [0, 0, 1, 1], [], []>} : vector<8x256xf32>, vector<256x256xf32>, vector<8x256xf32> -> vector<8x256xf32>
    %c0_15 = arith.constant 0 : index
    %c0_16 = arith.constant 0 : index
    %19 = vector.load %arg7[%c0_15, %c0_16] : memref<1x256xf32, #tpu.memory_space<vmem>>, vector<1x256xf32>
    %20 = vector.broadcast %19 : vector<1x256xf32> to vector<8x256xf32>
    %21 = arith.addf %18, %20 : vector<8x256xf32>
    %cst_17 = arith.constant 0.000000e+00 : f32
    %22 = vector.broadcast %cst_17 : f32 to vector<8x256xf32>
    %23 = arith.maximumf %21, %22 : vector<8x256xf32>
    %c0_18 = arith.constant 0 : index
    %c0_19 = arith.constant 0 : index
    %24 = vector.load %arg8[%c0_18, %c0_19] : memref<1x256xf32, #tpu.memory_space<vmem>>, vector<1x256xf32>
    %25 = vector.broadcast %24 : vector<1x256xf32> to vector<8x256xf32>
    %26 = arith.mulf %15, %25 : vector<8x256xf32>
    %cst_20 = arith.constant dense<0.000000e+00> : vector<8xf32>
    %27 = vector.multi_reduction <add>, %26, %cst_20 [1] : vector<8x256xf32> to vector<8xf32>
    %28 = vector.shape_cast %27 : vector<8xf32> to vector<8x1xf32>
    %c0_21 = arith.constant 0 : index
    %c0_22 = arith.constant 0 : index
    %29 = vector.load %arg9[%c0_21, %c0_22] : memref<1x256xf32, #tpu.memory_space<vmem>>, vector<1x256xf32>
    %30 = vector.broadcast %29 : vector<1x256xf32> to vector<8x256xf32>
    %31 = arith.mulf %23, %30 : vector<8x256xf32>
    %cst_23 = arith.constant dense<0.000000e+00> : vector<8xf32>
    %32 = vector.multi_reduction <add>, %31, %cst_23 [1] : vector<8x256xf32> to vector<8xf32>
    %33 = vector.shape_cast %32 : vector<8xf32> to vector<8x1xf32>
    %34 = tpu.iota {dimensions = array<i32: 1>} : vector<8x128xi32>
    %c0_i32 = arith.constant 0 : i32
    %35 = vector.broadcast %c0_i32 : i32 to vector<8x128xi32>
    %36 = arith.cmpi eq, %34, %35 : vector<8x128xi32>
    %c1_i32 = arith.constant 1 : i32
    %37 = vector.broadcast %c1_i32 : i32 to vector<8x128xi32>
    %38 = arith.cmpi eq, %34, %37 : vector<8x128xi32>
    %cst_24 = arith.constant 0.000000e+00 : f32
    %39 = vector.shape_cast %33 : vector<8x1xf32> to vector<8x1xf32>
    %40 = vector.broadcast %39 : vector<8x1xf32> to vector<8x128xf32>
    %41 = vector.broadcast %cst_24 : f32 to vector<8x128xf32>
    %42 = arith.select %38, %40, %41 : vector<8x128xi1>, vector<8x128xf32>
    %43 = vector.shape_cast %28 : vector<8x1xf32> to vector<8x1xf32>
    %44 = vector.broadcast %43 : vector<8x1xf32> to vector<8x128xf32>
    %45 = arith.select %36, %44, %42 : vector<8x128xi1>, vector<8x128xf32>
    %c0_25 = arith.constant 0 : index
    %c0_26 = arith.constant 0 : index
    %46 = vector.load %arg10[%c0_25, %c0_26] : memref<1x128xf32, #tpu.memory_space<vmem>>, vector<1x128xf32>
    %47 = vector.broadcast %46 : vector<1x128xf32> to vector<8x128xf32>
    %48 = arith.addf %45, %47 : vector<8x128xf32>
    %c0_27 = arith.constant 0 : index
    %c0_28 = arith.constant 0 : index
    %49 = vector.load %arg11[%c0_27, %c0_28] : memref<8x128xf32, #tpu.memory_space<vmem>>, vector<8x128xf32>
    tpu.vector_store %arg11[%c0_27, %c0_28], %48 {strides = array<i32>} : memref<8x128xf32, #tpu.memory_space<vmem>>, vector<8x128xf32>,
    return
  }
  func.func @transform_0(%arg0: i32) -> (i32, i32) {
    %c0_i32 = arith.constant 0 : i32
    %c0_i32_0 = arith.constant 0 : i32
    return %arg0, %c0_i32 : i32, i32
  }
  func.func @transform_1(%arg0: i32) -> (i32, i32) {
    %c0_i32 = arith.constant 0 : i32
    %c0_i32_0 = arith.constant 0 : i32
    %c0_i32_1 = arith.constant 0 : i32
    return %c0_i32, %c0_i32_0 : i32, i32
  }
  func.func @transform_2(%arg0: i32) -> (i32, i32) {
    %c0_i32 = arith.constant 0 : i32
    %c0_i32_0 = arith.constant 0 : i32
    %c0_i32_1 = arith.constant 0 : i32
    return %c0_i32, %c0_i32_0 : i32, i32
  }
  func.func @transform_3(%arg0: i32) -> (i32, i32) {
    %c0_i32 = arith.constant 0 : i32
    %c0_i32_0 = arith.constant 0 : i32
    %c0_i32_1 = arith.constant 0 : i32
    return %c0_i32, %c0_i32_0 : i32, i32
  }
  func.func @transform_4(%arg0: i32) -> (i32, i32) {
    %c0_i32 = arith.constant 0 : i32
    %c0_i32_0 = arith.constant 0 : i32
    %c0_i32_1 = arith.constant 0 : i32
    return %c0_i32, %c0_i32_0 : i32, i32
  }
  func.func @transform_5(%arg0: i32) -> (i32, i32) {
    %c0_i32 = arith.constant 0 : i32
    %c0_i32_0 = arith.constant 0 : i32
    %c0_i32_1 = arith.constant 0 : i32
    return %c0_i32, %c0_i32_0 : i32, i32
  }
  func.func @transform_6(%arg0: i32) -> (i32, i32) {
    %c0_i32 = arith.constant 0 : i32
    %c0_i32_0 = arith.constant 0 : i32
    %c0_i32_1 = arith.constant 0 : i32
    return %c0_i32, %c0_i32_0 : i32, i32
  }
  func.func @transform_7(%arg0: i32) -> (i32, i32) {
    %c0_i32 = arith.constant 0 : i32
    %c0_i32_0 = arith.constant 0 : i32
    %c0_i32_1 = arith.constant 0 : i32
    return %c0_i32, %c0_i32_0 : i32, i32
  }
  func.func @transform_8(%arg0: i32) -> (i32, i32) {
    %c0_i32 = arith.constant 0 : i32
    %c0_i32_0 = arith.constant 0 : i32
    %c0_i32_1 = arith.constant 0 : i32
    return %c0_i32, %c0_i32_0 : i32, i32
  }
  func.func @transform_9(%arg0: i32) -> (i32, i32) {
    %c0_i32 = arith.constant 0 : i32
    %c0_i32_0 = arith.constant 0 : i32
    %c0_i32_1 = arith.constant 0 : i32
    return %c0_i32, %c0_i32_0 : i32, i32
  }
  func.func @transform_10(%arg0: i32) -> (i32, i32) {
    %c0_i32 = arith.constant 0 : i32
    %c0_i32_0 = arith.constant 0 : i32
    return %arg0, %c0_i32 : i32, i32
  }
}

</mosaic_0001>

<llo_original>
// kernel: qnet1_forward.1
$region0: #{qnet1_forward.1}
  #allocation0 [shape = 'u32[]', space=smem, size = 0x4, offset = 0x4, fixed_abs, tag = 'smem constant byte address 0x4 - core index']
  #allocation1 [shape = 'u32[144,128]{1,0:T(1,128)}', space=vmem, size = 0x12000, scoped, tag = 'internal scratch']
  %s0 = inlined_call_operand.vmem [shape: f32[8,128], index: 0, kind: input, shape index: {}]
  %s1 = inlined_call_operand.hbm [shape: f32[128,512], index: 1, kind: input, shape index: {}]
  %s2 = inlined_call_operand.vmem [shape: f32[1,512], index: 2, kind: input, shape index: {}]
  %s3 = inlined_call_operand.hbm [shape: f32[256,256], index: 3, kind: input, shape index: {}]
  %s4 = inlined_call_operand.vmem [shape: f32[1,256], index: 4, kind: input, shape index: {}]
  %s5 = inlined_call_operand.hbm [shape: f32[256,256], index: 5, kind: input, shape index: {}]
  %s6 = inlined_call_operand.vmem [shape: f32[1,256], index: 6, kind: input, shape index: {}]
  %s7 = inlined_call_operand.vmem [shape: f32[1,256], index: 7, kind: input, shape index: {}]
  %s8 = inlined_call_operand.vmem [shape: f32[1,256], index: 8, kind: input, shape index: {}]
  %s9 = inlined_call_operand.vmem [shape: f32[1,128], index: 9, kind: input, shape index: {}]
  %s10 = inlined_call_operand.vmem [shape: f32[8,128], index: 10, kind: output, shape index: {}]
  %s11 = sld [smem:[#allocation0]]
  $region62: #{qnet1_forward.1} parent=0
    _
  %s13 = ssub.s32 1, %s11
  %s14 = scalar_select 0, %s13, %s11
  $region1: #{qnet1_forward.1} parent=0
    #allocation2 [shape = 'u8[262144]{0}', space=vmem, size = 0x40000, scoped, tag = 'input window, operand 1, single buffered']
    #allocation3 [shape = 's32[1]{0}', space=sflag, size = 0x4, scoped, tag = 'scoped memory for qnet1_forward.1']
    #allocation4 [shape = 'u8[262144]{0}', space=vmem, size = 0x40000, scoped, tag = 'input window, operand 3, single buffered']
    #allocation5 [shape = 's32[1]{0}', space=sflag, size = 0x4, scoped, tag = 'scoped memory for qnet1_forward.1']
    #allocation6 [shape = 'u8[262144]{0}', space=vmem, size = 0x40000, scoped, tag = 'input window, operand 5, single buffered']
    %15 = vsyncpa [#allocation3], 0
    %16 = vsyncpa [#allocation5], 0
    // Predicated region
    $region2: #{qnet1_forward.1} parent=1 // pred_check
      _
    $region3: #{qnet1_forward.1} parent=1 // pred_check_branch
      %18 = sbr.rel (0) target = $region5
    $region4: #{qnet1_forward.1} parent=1 // pred_region
      _
    $region5: #{qnet1_forward.1} parent=1 // pred_fallthru
      _
    // Predicated region
    $region6: #{qnet1_forward.1} parent=1 // pred_check
      _
    $region7: #{qnet1_forward.1} parent=1 // pred_check_branch
      %20 = sbr.rel (0) target = $region9
    $region8: #{qnet1_forward.1} parent=1 // pred_region
      %s22 = ssub.s32 8192, 8192
      %23 = vsyncadd [#allocation3], %s22
      %s24 = sshll.u32 [#allocation2], 4
      %s25 = int_to_ptr.vmem [resolvable:$true] %s24
      %30 = dma.hbm_to_vmem [thread:$0]  %s1, 8192, %s25, [#allocation3], 512, 512, 32
    $region9: #{qnet1_forward.1} parent=1 // pred_fallthru
      _
    // Predicated region
    $region10: #{qnet1_forward.1} parent=1 // pred_check
      _
    $region11: #{qnet1_forward.1} parent=1 // pred_check_branch
      %32 = sbr.rel (0) target = $region13
    $region12: #{qnet1_forward.1} parent=1 // pred_region
      _
    $region13: #{qnet1_forward.1} parent=1 // pred_fallthru
      _
    // Predicated region
    $region14: #{qnet1_forward.1} parent=1 // pred_check
      _
    $region15: #{qnet1_forward.1} parent=1 // pred_check_branch
      %34 = sbr.rel (0) target = $region17
    $region16: #{qnet1_forward.1} parent=1 // pred_region
      %s36 = ssub.s32 8192, 8192
      %37 = vsyncadd [#allocation5], %s36
      %s38 = sshll.u32 [#allocation4], 4
      %s39 = int_to_ptr.vmem [resolvable:$true] %s38
      %44 = dma.hbm_to_vmem [thread:$0]  %s3, 8192, %s39, [#allocation5], 256, 256, 16
    $region17: #{qnet1_forward.1} parent=1 // pred_fallthru
      _
    // Predicated region
    $region18: #{qnet1_forward.1} parent=1 // pred_check
      _
    $region19: #{qnet1_forward.1} parent=1 // pred_check_branch
      %46 = sbr.rel (0) target = $region21
    $region20: #{qnet1_forward.1} parent=1 // pred_region
      _
    $region21: #{qnet1_forward.1} parent=1 // pred_fallthru
      _
    // Predicated region
    $region22: #{qnet1_forward.1} parent=1 // pred_check
      _
    $region23: #{qnet1_forward.1} parent=1 // pred_check_branch
      %48 = sbr.rel (0) target = $region25
    $region24: #{qnet1_forward.1} parent=1 // pred_region
      %s50 = ssub.s32 8192, 8192
      %51 = vsyncadd [#allocation5], %s50
      %s52 = sshll.u32 [#allocation6], 4
      %s53 = int_to_ptr.vmem [resolvable:$true] %s52
      %58 = dma.hbm_to_vmem [thread:$0]  %s5, 8192, %s53, [#allocation5], 256, 256, 16
    $region25: #{qnet1_forward.1} parent=1 // pred_fallthru
      _
    // Predicated region
    $region26: #{qnet1_forward.1} parent=1 // pred_check
      _
    $region27: #{qnet1_forward.1} parent=1 // pred_check_branch
      %60 = sbr.rel (0) target = $region29
    $region28: #{qnet1_forward.1} parent=1 // pred_region
      _
    $region29: #{qnet1_forward.1} parent=1 // pred_fallthru
      _
    // Predicated region
    $region30: #{qnet1_forward.1} parent=1 // pred_check
      _
    $region31: #{qnet1_forward.1} parent=1 // pred_check_branch
      %62 = sbr.rel (0) target = $region33
    $region32: #{qnet1_forward.1} parent=1 // pred_region
      _
    $region33: #{qnet1_forward.1} parent=1 // pred_fallthru
      _
    // Predicated region
    $region34: #{qnet1_forward.1} parent=1 // pred_check
      _
    $region35: #{qnet1_forward.1} parent=1 // pred_check_branch
      %64 = sbr.rel (0) target = $region37
    $region36: #{qnet1_forward.1} parent=1 // pred_region
      _
    $region37: #{qnet1_forward.1} parent=1 // pred_fallthru
      _
    // Predicated region
    $region38: #{qnet1_forward.1} parent=1 // pred_check
      _
    $region39: #{qnet1_forward.1} parent=1 // pred_check_branch
      %66 = sbr.rel (0) target = $region41
    $region40: #{qnet1_forward.1} parent=1 // pred_region
      _
    $region41: #{qnet1_forward.1} parent=1 // pred_fallthru
      _
    // Predicated region
    $region42: #{qnet1_forward.1} parent=1 // pred_check
      _
    $region43: #{qnet1_forward.1} parent=1 // pred_check_branch
      %68 = sbr.rel (0) target = $region45
    $region44: #{qnet1_forward.1} parent=1 // pred_region
      %69 = dma.done [#allocation3], 8192
    $region45: #{qnet1_forward.1} parent=1 // pred_fallthru
      _
    // Predicated region
    $region46: #{qnet1_forward.1} parent=1 // pred_check
      _
    $region47: #{qnet1_forward.1} parent=1 // pred_check_branch
      %71 = sbr.rel (0) target = $region49
    $region48: #{qnet1_forward.1} parent=1 // pred_region
      %72 = dma.done [#allocation5], 8192
    $region49: #{qnet1_forward.1} parent=1 // pred_fallthru
      _
    // Predicated region
    $region50: #{qnet1_forward.1} parent=1 // pred_check
      _
    $region51: #{qnet1_forward.1} parent=1 // pred_check_branch
      %74 = sbr.rel (0) target = $region53
    $region52: #{qnet1_forward.1} parent=1 // pred_region
      %75 = dma.done [#allocation5], 8192
    $region53: #{qnet1_forward.1} parent=1 // pred_fallthru
      _
    %v76 = vld [vmem:[%s0] sm:$0xff]
    %v77 = vld [vmem:[#allocation2] sm:$0xff]
    %v78 = vld [vmem:[#allocation2 + $0x8] sm:$0xff]
    %v79 = vld [vmem:[#allocation2 + $0x10] sm:$0xff]
    %v80 = vld [vmem:[#allocation2 + $0x18] sm:$0xff]
    %v81 = vld [vmem:[#allocation2 + $0x20] sm:$0xff]
    %v82 = vld [vmem:[#allocation2 + $0x28] sm:$0xff]
    %v83 = vld [vmem:[#allocation2 + $0x30] sm:$0xff]
    %v84 = vld [vmem:[#allocation2 + $0x38] sm:$0xff]
    %v85 = vld [vmem:[#allocation2 + $0x40] sm:$0xff]
    %v86 = vld [vmem:[#allocation2 + $0x48] sm:$0xff]
    %v87 = vld [vmem:[#allocation2 + $0x50] sm:$0xff]
    %v88 = vld [vmem:[#allocation2 + $0x58] sm:$0xff]
    %v89 = vld [vmem:[#allocation2 + $0x60] sm:$0xff]
    %v90 = vld [vmem:[#allocation2 + $0x68] sm:$0xff]
    %v91 = vld [vmem:[#allocation2 + $0x70] sm:$0xff]
    %v92 = vld [vmem:[#allocation2 + $0x78] sm:$0xff]
    %v93 = vld [vmem:[#allocation2 + $0x80] sm:$0xff]
    %v94 = vld [vmem:[#allocation2 + $0x88] sm:$0xff]
    %v95 = vld [vmem:[#allocation2 + $0x90] sm:$0xff]
    %v96 = vld [vmem:[#allocation2 + $0x98] sm:$0xff]
    %v97 = vld [vmem:[#allocation2 + $0xa0] sm:$0xff]
    %v98 = vld [vmem:[#allocation2 + $0xa8] sm:$0xff]
    %v99 = vld [vmem:[#allocation2 + $0xb0] sm:$0xff]
    %v100 = vld [vmem:[#allocation2 + $0xb8] sm:$0xff]
    %v101 = vld [vmem:[#allocation2 + $0xc0] sm:$0xff]
    %v102 = vld [vmem:[#allocation2 + $0xc8] sm:$0xff]
    %v103 = vld [vmem:[#allocation2 + $0xd0] sm:$0xff]
    %v104 = vld [vmem:[#allocation2 + $0xd8] sm:$0xff]
    %v105 = vld [vmem:[#allocation2 + $0xe0] sm:$0xff]
    %v106 = vld [vmem:[#allocation2 + $0xe8] sm:$0xff]
    %v107 = vld [vmem:[#allocation2 + $0xf0] sm:$0xff]
    %v108 = vld [vmem:[#allocation2 + $0xf8] sm:$0xff]
    %v109 = vld [vmem:[#allocation2 + $0x100] sm:$0xff]
    %v110 = vld [vmem:[#allocation2 + $0x108] sm:$0xff]
    %v111 = vld [vmem:[#allocation2 + $0x110] sm:$0xff]
    %v112 = vld [vmem:[#allocation2 + $0x118] sm:$0xff]
    %v113 = vld [vmem:[#allocation2 + $0x120] sm:$0xff]
    %v114 = vld [vmem:[#allocation2 + $0x128] sm:$0xff]
    %v115 = vld [vmem:[#allocation2 + $0x130] sm:$0xff]
    %v116 = vld [vmem:[#allocation2 + $0x138] sm:$0xff]
    %v117 = vld [vmem:[#allocation2 + $0x140] sm:$0xff]
    %v118 = vld [vmem:[#allocation2 + $0x148] sm:$0xff]
    %v119 = vld [vmem:[#allocation2 + $0x150] sm:$0xff]
    %v120 = vld [vmem:[#allocation2 + $0x158] sm:$0xff]
    %v121 = vld [vmem:[#allocation2 + $0x160] sm:$0xff]
    %v122 = vld [vmem:[#allocation2 + $0x168] sm:$0xff]
    %v123 = vld [vmem:[#allocation2 + $0x170] sm:$0xff]
    %v124 = vld [vmem:[#allocation2 + $0x178] sm:$0xff]
    %v125 = vld [vmem:[#allocation2 + $0x180] sm:$0xff]
    %v126 = vld [vmem:[#allocation2 + $0x188] sm:$0xff]
    %v127 = vld [vmem:[#allocation2 + $0x190] sm:$0xff]
    %v128 = vld [vmem:[#allocation2 + $0x198] sm:$0xff]
    %v129 = vld [vmem:[#allocation2 + $0x1a0] sm:$0xff]
    %v130 = vld [vmem:[#allocation2 + $0x1a8] sm:$0xff]
    %v131 = vld [vmem:[#allocation2 + $0x1b0] sm:$0xff]
    %v132 = vld [vmem:[#allocation2 + $0x1b8] sm:$0xff]
    %v133 = vld [vmem:[#allocation2 + $0x1c0] sm:$0xff]
    %v134 = vld [vmem:[#allocation2 + $0x1c8] sm:$0xff]
    %v135 = vld [vmem:[#allocation2 + $0x1d0] sm:$0xff]
    %v136 = vld [vmem:[#allocation2 + $0x1d8] sm:$0xff]
    %v137 = vld [vmem:[#allocation2 + $0x1e0] sm:$0xff]
    %v138 = vld [vmem:[#allocation2 + $0x1e8] sm:$0xff]
    %v139 = vld [vmem:[#allocation2 + $0x1f0] sm:$0xff]
    %v140 = vld [vmem:[#allocation2 + $0x1f8] sm:$0xff]
    %v141 = vld [vmem:[%s2] sm:$0xf]
    %v143 = vlaneseq
    %v144 = vshrl.u32 %v143, 7
    %v145 = vsub.s32 0, %v144
    %v146 = vrot.slane %v141, %v145
    %v147 = vlaneseq
    %v148 = vshrl.u32 %v147, 7
    %v149 = vsub.s32 1, %v148
    %v150 = vrot.slane %v141, %v149
    %v151 = vlaneseq
    %v152 = vshrl.u32 %v151, 7
    %v153 = vsub.s32 2, %v152
    %v154 = vrot.slane %v141, %v153
    %v155 = vlaneseq
    %v156 = vshrl.u32 %v155, 7
    %v157 = vsub.s32 3, %v156
    %v158 = vrot.slane %v141, %v157
    %163 = vmatprep.subr.mxu0 %v78
    %164 = vmatpush1.msra.mxu0 %v77
    %165 = vmatprep.subr.mxu0 %v82
    %166 = vmatpush1.msra.mxu0 %v81
    %167 = vmatprep.subr.mxu0 %v86
    %168 = vmatpush1.msra.mxu0 %v85
    %169 = vmatprep.subr.mxu0 %v90
    %170 = vmatpush1.msra.mxu0 %v89
    %171 = vmatprep.subr.mxu0 %v94
    %172 = vmatpush1.msra.mxu0 %v93
    %173 = vmatprep.subr.mxu0 %v98
    %174 = vmatpush1.msra.mxu0 %v97
    %175 = vmatprep.subr.mxu0 %v102
    %176 = vmatpush1.msra.mxu0 %v101
    %177 = vmatprep.subr.mxu0 %v106
    %178 = vmatpush1.msra.mxu0 %v105
    %179 = vmatprep.subr.mxu0 %v110
    %180 = vmatpush1.msra.mxu0 %v109
    %181 = vmatprep.subr.mxu0 %v114
    %182 = vmatpush1.msra.mxu0 %v113
    %183 = vmatprep.subr.mxu0 %v118
    %184 = vmatpush1.msra.mxu0 %v117
    %185 = vmatprep.subr.mxu0 %v122
    %186 = vmatpush1.msra.mxu0 %v121
    %187 = vmatprep.subr.mxu0 %v126
    %188 = vmatpush1.msra.mxu0 %v125
    %189 = vmatprep.subr.mxu0 %v130
    %190 = vmatpush1.msra.mxu0 %v129
    %191 = vmatprep.subr.mxu0 %v134
    %192 = vmatpush1.msra.mxu0 %v133
    %193 = vmatprep.subr.mxu0 %v138
    %194 = vmatpush1.msra.mxu0 %v137
    %195 = vmatprep.subr.mxu0 0.0
    %196 = vmatpush1.msra.mxu0 0.0
    %197 = vmatprep.subr.mxu0 0.0
    %198 = vmatpush1.msra.mxu0 0.0
    %199 = vmatprep.subr.mxu0 0.0
    %200 = vmatpush1.msra.mxu0 0.0
    %201 = vmatprep.subr.mxu0 0.0
    %202 = vmatpush1.msra.mxu0 0.0
    %203 = vmatprep.subr.mxu0 0.0
    %204 = vmatpush1.msra.mxu0 0.0
    %205 = vmatprep.subr.mxu0 0.0
    %206 = vmatpush1.msra.mxu0 0.0
    %207 = vmatprep.subr.mxu0 0.0
    %208 = vmatpush1.msra.mxu0 0.0
    %209 = vmatprep.subr.mxu0 0.0
    %210 = vmatpush1.msra.mxu0 0.0
    %211 = vmatprep.subr.mxu0 0.0
    %212 = vmatpush1.msra.mxu0 0.0
    %213 = vmatprep.subr.mxu0 0.0
    %214 = vmatpush1.msra.mxu0 0.0
    %215 = vmatprep.subr.mxu0 0.0
    %216 = vmatpush1.msra.mxu0 0.0
    %217 = vmatprep.subr.mxu0 0.0
    %218 = vmatpush1.msra.mxu0 0.0
    %219 = vmatprep.subr.mxu0 0.0
    %220 = vmatpush1.msra.mxu0 0.0
    %221 = vmatprep.subr.mxu0 0.0
    %222 = vmatpush1.msra.mxu0 0.0
    %223 = vmatprep.subr.mxu0 0.0
    %224 = vmatpush1.msra.mxu0 0.0
    %225 = vmatprep.subr.mxu0 0.0
    %226 = vmatpush1.msra.mxu0 0.0
    %227 = vmatprep.mubr.f32.mxu0 0.0
    %228 = vmatmul.mubr.f32.gmra.mrb[0].mxu0 %v76
    %v229 = vpop.f32.mrb[0].mxu0
    %v230 = vadd.f32 %v146, %v229
    %v231 = vpop.f32.mrb[0].mxu0
    %v232 = vadd.f32 %v150, %v231
    %233 = vdwg.mxu0
    %234 = vmatprep.subr.mxu0 %v80
    %235 = vmatpush1.msra.mxu0 %v79
    %236 = vmatprep.subr.mxu0 %v84
    %237 = vmatpush1.msra.mxu0 %v83
    %238 = vmatprep.subr.mxu0 %v88
    %239 = vmatpush1.msra.mxu0 %v87
    %240 = vmatprep.subr.mxu0 %v92
    %241 = vmatpush1.msra.mxu0 %v91
    %242 = vmatprep.subr.mxu0 %v96
    %243 = vmatpush1.msra.mxu0 %v95
    %244 = vmatprep.subr.mxu0 %v100
    %245 = vmatpush1.msra.mxu0 %v99
    %246 = vmatprep.subr.mxu0 %v104
    %247 = vmatpush1.msra.mxu0 %v103
    %248 = vmatprep.subr.mxu0 %v108
    %249 = vmatpush1.msra.mxu0 %v107
    %250 = vmatprep.subr.mxu0 %v112
    %251 = vmatpush1.msra.mxu0 %v111
    %252 = vmatprep.subr.mxu0 %v116
    %253 = vmatpush1.msra.mxu0 %v115
    %254 = vmatprep.subr.mxu0 %v120
    %255 = vmatpush1.msra.mxu0 %v119
    %256 = vmatprep.subr.mxu0 %v124
    %257 = vmatpush1.msra.mxu0 %v123
    %258 = vmatprep.subr.mxu0 %v128
    %259 = vmatpush1.msra.mxu0 %v127
    %260 = vmatprep.subr.mxu0 %v132
    %261 = vmatpush1.msra.mxu0 %v131
    %262 = vmatprep.subr.mxu0 %v136
    %263 = vmatpush1.msra.mxu0 %v135
    %264 = vmatprep.subr.mxu0 %v140
    %265 = vmatpush1.msra.mxu0 %v139
    %266 = vmatprep.subr.mxu0 0.0
    %267 = vmatpush1.msra.mxu0 0.0
    %268 = vmatprep.subr.mxu0 0.0
    %269 = vmatpush1.msra.mxu0 0.0
    %270 = vmatprep.subr.mxu0 0.0
    %271 = vmatpush1.msra.mxu0 0.0
    %272 = vmatprep.subr.mxu0 0.0
    %273 = vmatpush1.msra.mxu0 0.0
    %274 = vmatprep.subr.mxu0 0.0
    %275 = vmatpush1.msra.mxu0 0.0
    %276 = vmatprep.subr.mxu0 0.0
    %277 = vmatpush1.msra.mxu0 0.0
    %278 = vmatprep.subr.mxu0 0.0
    %279 = vmatpush1.msra.mxu0 0.0
    %280 = vmatprep.subr.mxu0 0.0
    %281 = vmatpush1.msra.mxu0 0.0
    %282 = vmatprep.subr.mxu0 0.0
    %283 = vmatpush1.msra.mxu0 0.0
    %284 = vmatprep.subr.mxu0 0.0
    %285 = vmatpush1.msra.mxu0 0.0
    %286 = vmatprep.subr.mxu0 0.0
    %287 = vmatpush1.msra.mxu0 0.0
    %288 = vmatprep.subr.mxu0 0.0
    %289 = vmatpush1.msra.mxu0 0.0
    %290 = vmatprep.subr.mxu0 0.0
    %291 = vmatpush1.msra.mxu0 0.0
    %292 = vmatprep.subr.mxu0 0.0
    %293 = vmatpush1.msra.mxu0 0.0
    %294 = vmatprep.subr.mxu0 0.0
    %295 = vmatpush1.msra.mxu0 0.0
    %296 = vmatprep.subr.mxu0 0.0
    %297 = vmatpush1.msra.mxu0 0.0
    %298 = vmatprep.mubr.f32.mxu0 0.0
    %299 = vmatmul.mubr.f32.gmra.mrb[0].mxu0 %v76
    %v300 = vpop.f32.mrb[0].mxu0
    %v301 = vadd.f32 %v154, %v300
    %v302 = vpop.f32.mrb[0].mxu0
    %v303 = vadd.f32 %v158, %v302
    %304 = vdwg.mxu0
    %v305 = vmax.f32 %v230, 0.0
    %v306 = vmax.f32 %v232, 0.0
    %v307 = vmax.f32 %v301, 0.0
    %v308 = vmax.f32 %v303, 0.0
    %v309 = vld [vmem:[#allocation4] sm:$0xff]
    %v310 = vld [vmem:[#allocation4 + $0x8] sm:$0xff]
    %v311 = vld [vmem:[#allocation4 + $0x10] sm:$0xff]
    %v312 = vld [vmem:[#allocation4 + $0x18] sm:$0xff]
    %v313 = vld [vmem:[#allocation4 + $0x20] sm:$0xff]
    %v314 = vld [vmem:[#allocation4 + $0x28] sm:$0xff]
    %v315 = vld [vmem:[#allocation4 + $0x30] sm:$0xff]
    %v316 = vld [vmem:[#allocation4 + $0x38] sm:$0xff]
    %v317 = vld [vmem:[#allocation4 + $0x40] sm:$0xff]
    %v318 = vld [vmem:[#allocation4 + $0x48] sm:$0xff]
    %v319 = vld [vmem:[#allocation4 + $0x50] sm:$0xff]
    %v320 = vld [vmem:[#allocation4 + $0x58] sm:$0xff]
    %v321 = vld [vmem:[#allocation4 + $0x60] sm:$0xff]
    %v322 = vld [vmem:[#allocation4 + $0x68] sm:$0xff]
    %v323 = vld [vmem:[#allocation4 + $0x70] sm:$0xff]
    %v324 = vld [vmem:[#allocation4 + $0x78] sm:$0xff]
    %v325 = vld [vmem:[#allocation4 + $0x80] sm:$0xff]
    %v326 = vld [vmem:[#allocation4 + $0x88] sm:$0xff]
    %v327 = vld [vmem:[#allocation4 + $0x90] sm:$0xff]
    %v328 = vld [vmem:[#allocation4 + $0x98] sm:$0xff]
    %v329 = vld [vmem:[#allocation4 + $0xa0] sm:$0xff]
    %v330 = vld [vmem:[#allocation4 + $0xa8] sm:$0xff]
    %v331 = vld [vmem:[#allocation4 + $0xb0] sm:$0xff]
    %v332 = vld [vmem:[#allocation4 + $0xb8] sm:$0xff]
    %v333 = vld [vmem:[#allocation4 + $0xc0] sm:$0xff]
    %v334 = vld [vmem:[#allocation4 + $0xc8] sm:$0xff]
    %v335 = vld [vmem:[#allocation4 + $0xd0] sm:$0xff]
    %v336 = vld [vmem:[#allocation4 + $0xd8] sm:$0xff]
    %v337 = vld [vmem:[#allocation4 + $0xe0] sm:$0xff]
    %v338 = vld [vmem:[#allocation4 + $0xe8] sm:$0xff]
    %v339 = vld [vmem:[#allocation4 + $0xf0] sm:$0xff]
    %v340 = vld [vmem:[#allocation4 + $0xf8] sm:$0xff]
    %v341 = vld [vmem:[#allocation4 + $0x100] sm:$0xff]
    %v342 = vld [vmem:[#allocation4 + $0x108] sm:$0xff]
    %v343 = vld [vmem:[#allocation4 + $0x110] sm:$0xff]
    %v344 = vld [vmem:[#allocation4 + $0x118] sm:$0xff]
    %v345 = vld [vmem:[#allocation4 + $0x120] sm:$0xff]
    %v346 = vld [vmem:[#allocation4 + $0x128] sm:$0xff]
    %v347 = vld [vmem:[#allocation4 + $0x130] sm:$0xff]
    %v348 = vld [vmem:[#allocation4 + $0x138] sm:$0xff]
    %v349 = vld [vmem:[#allocation4 + $0x140] sm:$0xff]
    %v350 = vld [vmem:[#allocation4 + $0x148] sm:$0xff]
    %v351 = vld [vmem:[#allocation4 + $0x150] sm:$0xff]
    %v352 = vld [vmem:[#allocation4 + $0x158] sm:$0xff]
    %v353 = vld [vmem:[#allocation4 + $0x160] sm:$0xff]
    %v354 = vld [vmem:[#allocation4 + $0x168] sm:$0xff]
    %v355 = vld [vmem:[#allocation4 + $0x170] sm:$0xff]
    %v356 = vld [vmem:[#allocation4 + $0x178] sm:$0xff]
    %v357 = vld [vmem:[#allocation4 + $0x180] sm:$0xff]
    %v358 = vld [vmem:[#allocation4 + $0x188] sm:$0xff]
    %v359 = vld [vmem:[#allocation4 + $0x190] sm:$0xff]
    %v360 = vld [vmem:[#allocation4 + $0x198] sm:$0xff]
    %v361 = vld [vmem:[#allocation4 + $0x1a0] sm:$0xff]
    %v362 = vld [vmem:[#allocation4 + $0x1a8] sm:$0xff]
    %v363 = vld [vmem:[#allocation4 + $0x1b0] sm:$0xff]
    %v364 = vld [vmem:[#allocation4 + $0x1b8] sm:$0xff]
    %v365 = vld [vmem:[#allocation4 + $0x1c0] sm:$0xff]
    %v366 = vld [vmem:[#allocation4 + $0x1c8] sm:$0xff]
    %v367 = vld [vmem:[#allocation4 + $0x1d0] sm:$0xff]
    %v368 = vld [vmem:[#allocation4 + $0x1d8] sm:$0xff]
    %v369 = vld [vmem:[#allocation4 + $0x1e0] sm:$0xff]
    %v370 = vld [vmem:[#allocation4 + $0x1e8] sm:$0xff]
    %v371 = vld [vmem:[#allocation4 + $0x1f0] sm:$0xff]
    %v372 = vld [vmem:[#allocation4 + $0x1f8] sm:$0xff]
    %v373 = vld [vmem:[%s4] sm:$0x3]
    %v375 = vlaneseq
    %v376 = vshrl.u32 %v375, 7
    %v377 = vsub.s32 0, %v376
    %v378 = vrot.slane %v373, %v377
    %v379 = vlaneseq
    %v380 = vshrl.u32 %v379, 7
    %v381 = vsub.s32 1, %v380
    %v382 = vrot.slane %v373, %v381
    %385 = vmatprep.subr.mxu0 %v310
    %386 = vmatpush1.msra.mxu0 %v309
    %387 = vmatprep.subr.mxu0 %v312
    %388 = vmatpush1.msra.mxu0 %v311
    %389 = vmatprep.subr.mxu0 %v314
    %390 = vmatpush1.msra.mxu0 %v313
    %391 = vmatprep.subr.mxu0 %v316
    %392 = vmatpush1.msra.mxu0 %v315
    %393 = vmatprep.subr.mxu0 %v318
    %394 = vmatpush1.msra.mxu0 %v317
    %395 = vmatprep.subr.mxu0 %v320
    %396 = vmatpush1.msra.mxu0 %v319
    %397 = vmatprep.subr.mxu0 %v322
    %398 = vmatpush1.msra.mxu0 %v321
    %399 = vmatprep.subr.mxu0 %v324
    %400 = vmatpush1.msra.mxu0 %v323
    %401 = vmatprep.subr.mxu0 %v326
    %402 = vmatpush1.msra.mxu0 %v325
    %403 = vmatprep.subr.mxu0 %v328
    %404 = vmatpush1.msra.mxu0 %v327
    %405 = vmatprep.subr.mxu0 %v330
    %406 = vmatpush1.msra.mxu0 %v329
    %407 = vmatprep.subr.mxu0 %v332
    %408 = vmatpush1.msra.mxu0 %v331
    %409 = vmatprep.subr.mxu0 %v334
    %410 = vmatpush1.msra.mxu0 %v333
    %411 = vmatprep.subr.mxu0 %v336
    %412 = vmatpush1.msra.mxu0 %v335
    %413 = vmatprep.subr.mxu0 %v338
    %414 = vmatpush1.msra.mxu0 %v337
    %415 = vmatprep.subr.mxu0 %v340
    %416 = vmatpush1.msra.mxu0 %v339
    %417 = vmatprep.subr.mxu0 %v342
    %418 = vmatpush1.msra.mxu0 %v341
    %419 = vmatprep.subr.mxu0 %v344
    %420 = vmatpush1.msra.mxu0 %v343
    %421 = vmatprep.subr.mxu0 %v346
    %422 = vmatpush1.msra.mxu0 %v345
    %423 = vmatprep.subr.mxu0 %v348
    %424 = vmatpush1.msra.mxu0 %v347
    %425 = vmatprep.subr.mxu0 %v350
    %426 = vmatpush1.msra.mxu0 %v349
    %427 = vmatprep.subr.mxu0 %v352
    %428 = vmatpush1.msra.mxu0 %v351
    %429 = vmatprep.subr.mxu0 %v354
    %430 = vmatpush1.msra.mxu0 %v353
    %431 = vmatprep.subr.mxu0 %v356
    %432 = vmatpush1.msra.mxu0 %v355
    %433 = vmatprep.subr.mxu0 %v358
    %434 = vmatpush1.msra.mxu0 %v357
    %435 = vmatprep.subr.mxu0 %v360
    %436 = vmatpush1.msra.mxu0 %v359
    %437 = vmatprep.subr.mxu0 %v362
    %438 = vmatpush1.msra.mxu0 %v361
    %439 = vmatprep.subr.mxu0 %v364
    %440 = vmatpush1.msra.mxu0 %v363
    %441 = vmatprep.subr.mxu0 %v366
    %442 = vmatpush1.msra.mxu0 %v365
    %443 = vmatprep.subr.mxu0 %v368
    %444 = vmatpush1.msra.mxu0 %v367
    %445 = vmatprep.subr.mxu0 %v370
    %446 = vmatpush1.msra.mxu0 %v369
    %447 = vmatprep.subr.mxu0 %v372
    %448 = vmatpush1.msra.mxu0 %v371
    %449 = vmatprep.mubr.f32.mxu0 %v306
    %450 = vmatmul.mubr.f32.gmra.mrb[0].mxu0 %v305
    %v451 = vpop.f32.mrb[0].mxu0
    %v452 = vadd.f32 %v378, %v451
    %v453 = vpop.f32.mrb[0].mxu0
    %v454 = vadd.f32 %v382, %v453
    %455 = vdwg.mxu0
    %v456 = vmax.f32 %v452, 0.0
    %v457 = vmax.f32 %v454, 0.0
    %v458 = vld [vmem:[#allocation6] sm:$0xff]
    %v459 = vld [vmem:[#allocation6 + $0x8] sm:$0xff]
    %v460 = vld [vmem:[#allocation6 + $0x10] sm:$0xff]
    %v461 = vld [vmem:[#allocation6 + $0x18] sm:$0xff]
    %v462 = vld [vmem:[#allocation6 + $0x20] sm:$0xff]
    %v463 = vld [vmem:[#allocation6 + $0x28] sm:$0xff]
    %v464 = vld [vmem:[#allocation6 + $0x30] sm:$0xff]
    %v465 = vld [vmem:[#allocation6 + $0x38] sm:$0xff]
    %v466 = vld [vmem:[#allocation6 + $0x40] sm:$0xff]
    %v467 = vld [vmem:[#allocation6 + $0x48] sm:$0xff]
    %v468 = vld [vmem:[#allocation6 + $0x50] sm:$0xff]
    %v469 = vld [vmem:[#allocation6 + $0x58] sm:$0xff]
    %v470 = vld [vmem:[#allocation6 + $0x60] sm:$0xff]
    %v471 = vld [vmem:[#allocation6 + $0x68] sm:$0xff]
    %v472 = vld [vmem:[#allocation6 + $0x70] sm:$0xff]
    %v473 = vld [vmem:[#allocation6 + $0x78] sm:$0xff]
    %v474 = vld [vmem:[#allocation6 + $0x80] sm:$0xff]
    %v475 = vld [vmem:[#allocation6 + $0x88] sm:$0xff]
    %v476 = vld [vmem:[#allocation6 + $0x90] sm:$0xff]
    %v477 = vld [vmem:[#allocation6 + $0x98] sm:$0xff]
    %v478 = vld [vmem:[#allocation6 + $0xa0] sm:$0xff]
    %v479 = vld [vmem:[#allocation6 + $0xa8] sm:$0xff]
    %v480 = vld [vmem:[#allocation6 + $0xb0] sm:$0xff]
    %v481 = vld [vmem:[#allocation6 + $0xb8] sm:$0xff]
    %v482 = vld [vmem:[#allocation6 + $0xc0] sm:$0xff]
    %v483 = vld [vmem:[#allocation6 + $0xc8] sm:$0xff]
    %v484 = vld [vmem:[#allocation6 + $0xd0] sm:$0xff]
    %v485 = vld [vmem:[#allocation6 + $0xd8] sm:$0xff]
    %v486 = vld [vmem:[#allocation6 + $0xe0] sm:$0xff]
    %v487 = vld [vmem:[#allocation6 + $0xe8] sm:$0xff]
    %v488 = vld [vmem:[#allocation6 + $0xf0] sm:$0xff]
    %v489 = vld [vmem:[#allocation6 + $0xf8] sm:$0xff]
    %v490 = vld [vmem:[#allocation6 + $0x100] sm:$0xff]
    %v491 = vld [vmem:[#allocation6 + $0x108] sm:$0xff]
    %v492 = vld [vmem:[#allocation6 + $0x110] sm:$0xff]
    %v493 = vld [vmem:[#allocation6 + $0x118] sm:$0xff]
    %v494 = vld [vmem:[#allocation6 + $0x120] sm:$0xff]
    %v495 = vld [vmem:[#allocation6 + $0x128] sm:$0xff]
    %v496 = vld [vmem:[#allocation6 + $0x130] sm:$0xff]
    %v497 = vld [vmem:[#allocation6 + $0x138] sm:$0xff]
    %v498 = vld [vmem:[#allocation6 + $0x140] sm:$0xff]
    %v499 = vld [vmem:[#allocation6 + $0x148] sm:$0xff]
    %v500 = vld [vmem:[#allocation6 + $0x150] sm:$0xff]
    %v501 = vld [vmem:[#allocation6 + $0x158] sm:$0xff]
    %v502 = vld [vmem:[#allocation6 + $0x160] sm:$0xff]
    %v503 = vld [vmem:[#allocation6 + $0x168] sm:$0xff]
    %v504 = vld [vmem:[#allocation6 + $0x170] sm:$0xff]
    %v505 = vld [vmem:[#allocation6 + $0x178] sm:$0xff]
    %v506 = vld [vmem:[#allocation6 + $0x180] sm:$0xff]
    %v507 = vld [vmem:[#allocation6 + $0x188] sm:$0xff]
    %v508 = vld [vmem:[#allocation6 + $0x190] sm:$0xff]
    %v509 = vld [vmem:[#allocation6 + $0x198] sm:$0xff]
    %v510 = vld [vmem:[#allocation6 + $0x1a0] sm:$0xff]
    %v511 = vld [vmem:[#allocation6 + $0x1a8] sm:$0xff]
    %v512 = vld [vmem:[#allocation6 + $0x1b0] sm:$0xff]
    %v513 = vld [vmem:[#allocation6 + $0x1b8] sm:$0xff]
    %v514 = vld [vmem:[#allocation6 + $0x1c0] sm:$0xff]
    %v515 = vld [vmem:[#allocation6 + $0x1c8] sm:$0xff]
    %v516 = vld [vmem:[#allocation6 + $0x1d0] sm:$0xff]
    %v517 = vld [vmem:[#allocation6 + $0x1d8] sm:$0xff]
    %v518 = vld [vmem:[#allocation6 + $0x1e0] sm:$0xff]
    %v519 = vld [vmem:[#allocation6 + $0x1e8] sm:$0xff]
    %v520 = vld [vmem:[#allocation6 + $0x1f0] sm:$0xff]
    %v521 = vld [vmem:[#allocation6 + $0x1f8] sm:$0xff]
    %v522 = vld [vmem:[%s6] sm:$0x3]
    %v524 = vlaneseq
    %v525 = vshrl.u32 %v524, 7
    %v526 = vsub.s32 0, %v525
    %v527 = vrot.slane %v522, %v526
    %v528 = vlaneseq
    %v529 = vshrl.u32 %v528, 7
    %v530 = vsub.s32 1, %v529
    %v531 = vrot.slane %v522, %v530
    %534 = vmatprep.subr.mxu0 %v459
    %535 = vmatpush1.msra.mxu0 %v458
    %536 = vmatprep.subr.mxu0 %v461
    %537 = vmatpush1.msra.mxu0 %v460
    %538 = vmatprep.subr.mxu0 %v463
    %539 = vmatpush1.msra.mxu0 %v462
    %540 = vmatprep.subr.mxu0 %v465
    %541 = vmatpush1.msra.mxu0 %v464
    %542 = vmatprep.subr.mxu0 %v467
    %543 = vmatpush1.msra.mxu0 %v466
    %544 = vmatprep.subr.mxu0 %v469
    %545 = vmatpush1.msra.mxu0 %v468
    %546 = vmatprep.subr.mxu0 %v471
    %547 = vmatpush1.msra.mxu0 %v470
    %548 = vmatprep.subr.mxu0 %v473
    %549 = vmatpush1.msra.mxu0 %v472
    %550 = vmatprep.subr.mxu0 %v475
    %551 = vmatpush1.msra.mxu0 %v474
    %552 = vmatprep.subr.mxu0 %v477
    %553 = vmatpush1.msra.mxu0 %v476
    %554 = vmatprep.subr.mxu0 %v479
    %555 = vmatpush1.msra.mxu0 %v478
    %556 = vmatprep.subr.mxu0 %v481
    %557 = vmatpush1.msra.mxu0 %v480
    %558 = vmatprep.subr.mxu0 %v483
    %559 = vmatpush1.msra.mxu0 %v482
    %560 = vmatprep.subr.mxu0 %v485
    %561 = vmatpush1.msra.mxu0 %v484
    %562 = vmatprep.subr.mxu0 %v487
    %563 = vmatpush1.msra.mxu0 %v486
    %564 = vmatprep.subr.mxu0 %v489
    %565 = vmatpush1.msra.mxu0 %v488
    %566 = vmatprep.subr.mxu0 %v491
    %567 = vmatpush1.msra.mxu0 %v490
    %568 = vmatprep.subr.mxu0 %v493
    %569 = vmatpush1.msra.mxu0 %v492
    %570 = vmatprep.subr.mxu0 %v495
    %571 = vmatpush1.msra.mxu0 %v494
    %572 = vmatprep.subr.mxu0 %v497
    %573 = vmatpush1.msra.mxu0 %v496
    %574 = vmatprep.subr.mxu0 %v499
    %575 = vmatpush1.msra.mxu0 %v498
    %576 = vmatprep.subr.mxu0 %v501
    %577 = vmatpush1.msra.mxu0 %v500
    %578 = vmatprep.subr.mxu0 %v503
    %579 = vmatpush1.msra.mxu0 %v502
    %580 = vmatprep.subr.mxu0 %v505
    %581 = vmatpush1.msra.mxu0 %v504
    %582 = vmatprep.subr.mxu0 %v507
    %583 = vmatpush1.msra.mxu0 %v506
    %584 = vmatprep.subr.mxu0 %v509
    %585 = vmatpush1.msra.mxu0 %v508
    %586 = vmatprep.subr.mxu0 %v511
    %587 = vmatpush1.msra.mxu0 %v510
    %588 = vmatprep.subr.mxu0 %v513
    %589 = vmatpush1.msra.mxu0 %v512
    %590 = vmatprep.subr.mxu0 %v515
    %591 = vmatpush1.msra.mxu0 %v514
    %592 = vmatprep.subr.mxu0 %v517
    %593 = vmatpush1.msra.mxu0 %v516
    %594 = vmatprep.subr.mxu0 %v519
    %595 = vmatpush1.msra.mxu0 %v518
    %596 = vmatprep.subr.mxu0 %v521
    %597 = vmatpush1.msra.mxu0 %v520
    %598 = vmatprep.mubr.f32.mxu0 %v308
    %599 = vmatmul.mubr.f32.gmra.mrb[0].mxu0 %v307
    %v600 = vpop.f32.mrb[0].mxu0
    %v601 = vadd.f32 %v527, %v600
    %v602 = vpop.f32.mrb[0].mxu0
    %v603 = vadd.f32 %v531, %v602
    %604 = vdwg.mxu0
    %v605 = vmax.f32 %v601, 0.0
    %v606 = vmax.f32 %v603, 0.0
    %v607 = vld [vmem:[%s7] sm:$0x3]
    %v609 = vlaneseq
    %v610 = vshrl.u32 %v609, 7
    %v611 = vsub.s32 0, %v610
    %v612 = vrot.slane %v607, %v611
    %v613 = vlaneseq
    %v614 = vshrl.u32 %v613, 7
    %v615 = vsub.s32 1, %v614
    %v616 = vrot.slane %v607, %v615
    %v619 = vmul.f32 %v456, %v612
    %v620 = vmul.f32 %v457, %v616
    %v621 = vadd.f32 %v619, %v620
    %622 = vadd.xlane.f32.xlu0 %v621
    %v623 = vpop.xlane.xlu0 %622
    %v624 = vld [vmem:[%s8] sm:$0x3]
    %v626 = vlaneseq
    %v627 = vshrl.u32 %v626, 7
    %v628 = vsub.s32 0, %v627
    %v629 = vrot.slane %v624, %v628
    %v630 = vlaneseq
    %v631 = vshrl.u32 %v630, 7
    %v632 = vsub.s32 1, %v631
    %v633 = vrot.slane %v624, %v632
    %v636 = vmul.f32 %v605, %v629
    %v637 = vmul.f32 %v606, %v633
    %v638 = vadd.f32 %v636, %v637
    %639 = vadd.xlane.f32.xlu0 %v638
    %v640 = vpop.xlane.xlu0 %639
    %v641 = vlaneseq
    %v642 = vand.u32 %v641, 127
    %vm643 = vcmp.eq.s32.totalorder %v642, 0
    %vm644 = vcmp.eq.s32.totalorder %v642, 1
    %v645 = vsel %vm644, %v640, 0.0
    %v646 = vsel %vm643, %v623, %v645
    %v647 = vld [vmem:[%s9] sm:$0x1]
    %v649 = vlaneseq
    %v650 = vshrl.u32 %v649, 7
    %v651 = vsub.s32 0, %v650
    %v652 = vrot.slane %v647, %v651
    %v654 = vadd.f32 %v646, %v652
    %655 = vst [vmem:[%s10] sm:$0xff] %v654
    // Predicated region
    $region54: #{qnet1_forward.1} parent=1 // pred_check
      _
    $region55: #{qnet1_forward.1} parent=1 // pred_check_branch
      %657 = sbr.rel (0) target = $region57
    $region56: #{qnet1_forward.1} parent=1 // pred_region
      _
    $region57: #{qnet1_forward.1} parent=1 // pred_fallthru
      _
    // Predicated region
    $region58: #{qnet1_forward.1} parent=1 // pred_check
      _
    $region59: #{qnet1_forward.1} parent=1 // pred_check_branch
      %659 = sbr.rel (0) target = $region61
    $region60: #{qnet1_forward.1} parent=1 // pred_region
      _
    $region61: #{qnet1_forward.1} parent=1 // pred_fallthru
      _
    %660 = vsyncpa [#allocation3], 1
    %661 = vsyncpa [#allocation5], 1

</llo_original>
